<compile_context>
chip_gen: v6e
topology: v6e:2x2x1
jax: 0.10.0
libtpu: 0.0.40
codegen_flags: <defaults>
</compile_context>

<pallas_src>
import jax
import jax.numpy as jnp
from jax import lax
from jax.experimental import pallas as pl
from jax.experimental.pallas import tpu as pltpu

STATE_DIM = 6
ACTION_DIM = 2
HIDDEN = 32

_CHUNK = 128                                  # lane width of one inner sub-chunk
_TRANS_B = (((1,), (1,)), ((), ()))           # contract last dim of both operands


def _round_up(x, m):
    return ((x + m - 1) // m) * m


def critic_kernel(s_ref, a_ref, w1s_ref, w1a_ref, b1_ref, w2_ref, b2_ref,
                  w3_ref, b3_ref, o_ref):
    """One grid step: (bb,6)+(bb,2) batch-major inputs -> (1,bb) Q row."""
    bb = s_ref.shape[0]
    cb = min(_CHUNK, bb)
    n_chunks = bb // cb                       # bb is a multiple of cb by construction

    cdt = w1s_ref.dtype                       # MXU compute dtype (bf16 or f32)
    # Tiny weights: load once per grid step, live across the inner loop.
    w1s = w1s_ref[...]                        # (32, 6)
    w1a = w1a_ref[...]                        # (32, 2)
    b1 = b1_ref[...]                          # (32, 1) f32
    w2 = w2_ref[...]                          # (32, 32)
    b2 = b2_ref[...]                          # (32, 1) f32
    w3 = w3_ref[...]                          # (1, 32)
    b3 = b3_ref[...]                          # (1, 1) f32

    def chunk(c, carry):
        off = c * cb
        if cb % 128 == 0:
            off = pl.multiple_of(off, 128)    # aligned sublane slice / lane store

        # Batch-major chunks straight from the input blocks (no transpose).
        sc = s_ref[pl.ds(off, cb), :].astype(cdt)        # (cb, 6)
        ac = a_ref[pl.ds(off, cb), :].astype(cdt)        # (cb, 2)

        # Layer 1: transposed-rhs dots put the batch on the lane axis of h1;
        # the two dots share one f32 accumulator (replaces torch.cat).
        h1 = (lax.dot_general(w1s, sc, _TRANS_B, preferred_element_type=jnp.float32)
              + lax.dot_general(w1a, ac, _TRANS_B, preferred_element_type=jnp.float32)
              + b1)                                       # (32, cb) f32
        h1 = jnp.maximum(h1, 0.0)                         # ReLU in f32 (v5e-safe)

        # Layer 2
        h2 = jnp.dot(w2, h1.astype(cdt),
                     preferred_element_type=jnp.float32) + b2      # (32, cb) f32
        h2 = jnp.maximum(h2, 0.0)

        # Layer 3 (Q head)
        q = jnp.dot(w3, h2.astype(cdt),
                    preferred_element_type=jnp.float32) + b3       # (1, cb) f32

        o_ref[:, pl.ds(off, cb)] = q.astype(o_ref.dtype)           # lane-dense store
        return carry

    # Short static inner loop; unroll=True bounds live ranges and gives the
    # LLO scheduler full visibility.
    lax.fori_loop(0, n_chunks, chunk, 0, unroll=True)


def prepare_params(params, compute_dtype=jnp.bfloat16):
    """One-time weight re-layout / cast into the kernel's layout.

    Hoisted out of the forward call so the per-step path dispatches only the
    pallas_call (plus a free (1,B)->(B,1) relayout).
    """
    w1, b1, w2, b2, w3, b3 = params            # w*: [in, out], b*: [1, out]
    w1s = jnp.asarray(w1[:STATE_DIM].T, compute_dtype)      # (32, 6)
    w1a = jnp.asarray(w1[STATE_DIM:].T, compute_dtype)      # (32, 2)
    w2t = jnp.asarray(w2.T, compute_dtype)                  # (32, 32)
    w3t = jnp.asarray(w3.T, compute_dtype)                  # (1, 32)
    b1c = jnp.asarray(b1.reshape(HIDDEN, 1), jnp.float32)
    b2c = jnp.asarray(b2.reshape(HIDDEN, 1), jnp.float32)
    b3c = jnp.asarray(b3.reshape(1, 1), jnp.float32)
    return (w1s, w1a, b1c, w2t, b2c, w3t, b3c)


def _pick_block_b(B, block_b):
    assert block_b % 128 == 0, "block_b must be a multiple of 128"
    if B <= 128:
        return B                               # single full-extent block
    # Cap so the grid has >= 2 steps: both v7x TensorCores get batch tiles.
    half = max(128, _round_up((B + 1) // 2, 128))
    return min(block_b, _round_up(B, 128), half)


def critic_forward(state, action, prepared_params, *, block_b=2048):
    """state: (B, 6), action: (B, 2)  ->  (B, 1) Q-values.

    prepared_params: output of prepare_params (weights already in kernel
    layout and MXU dtype); accumulation is always f32.
    """
    w1s, w1a, b1, w2, b2, w3, b3 = prepared_params
    B = state.shape[0]
    bb = _pick_block_b(B, block_b)
    grid = (pl.cdiv(B, bb),)

    full = lambda i: (0, 0)                    # weights: same block every step

    q_row = pl.pallas_call(
        critic_kernel,
        out_shape=jax.ShapeDtypeStruct((1, B), jnp.float32),
        grid_spec=pltpu.PrefetchScalarGridSpec(
            num_scalar_prefetch=0,
            grid=grid,
            in_specs=[
                pl.BlockSpec((bb, STATE_DIM), lambda i: (i, 0)),     # state tile
                pl.BlockSpec((bb, ACTION_DIM), lambda i: (i, 0)),    # action tile
                pl.BlockSpec((HIDDEN, STATE_DIM), full),             # w1 (state part)
                pl.BlockSpec((HIDDEN, ACTION_DIM), full),            # w1 (action part)
                pl.BlockSpec((HIDDEN, 1), full),                     # b1
                pl.BlockSpec((HIDDEN, HIDDEN), full),                # w2
                pl.BlockSpec((HIDDEN, 1), full),                     # b2
                pl.BlockSpec((1, HIDDEN), full),                     # w3
                pl.BlockSpec((1, 1), full),                          # b3
            ],
            out_specs=pl.BlockSpec((1, bb), lambda i: (0, i)),       # lane-dense out
        ),
        compiler_params=pltpu.CompilerParams(
            dimension_semantics=("parallel",),   # batch tiles shard across TCs
        ),
    )(state, action, w1s, w1a, b1, w2, b2, w3, b3)

    return q_row.reshape(B, 1)                 # (1,B)->(B,1): free relayout


def init_params(key):
    """Deterministic init mirroring PyTorch nn.Linear default (U[-1/sqrt(fan_in), +])."""
    def linear(key, fan_in, fan_out):
        kw, kb = jax.random.split(key)
        bound = 1.0 / jnp.sqrt(fan_in)
        w = jax.random.uniform(kw, (fan_in, fan_out), jnp.float32, -bound, bound)
        b = jax.random.uniform(kb, (1, fan_out), jnp.float32, -bound, bound)
        return w, b

    k1, k2, k3 = jax.random.split(key, 3)
    w1, b1 = linear(k1, STATE_DIM + ACTION_DIM, HIDDEN)
    w2, b2 = linear(k2, HIDDEN, HIDDEN)
    w3, b3 = linear(k3, HIDDEN, 1)
    return (w1, b1, w2, b2, w3, b3)


def critic_forward_ref(state, action, params):
    """Pure-JAX reference for correctness checking."""
    x = jnp.concatenate([state, action], axis=1).astype(jnp.float32)
    w1, b1, w2, b2, w3, b3 = params
    h1 = jnp.maximum(x @ w1 + b1, 0.0)
    h2 = jnp.maximum(h1 @ w2 + b2, 0.0)
    return h2 @ w3 + b3


if __name__ == "__main__":
    key = jax.random.PRNGKey(0)
    k_params, k_state, k_action = jax.random.split(key, 3)

    params = init_params(k_params)
    prep_f32 = prepare_params(params, jnp.float32)
    prep_bf16 = prepare_params(params, jnp.bfloat16)   # default production config

    # --- check 1: tiny batch, single full-extent block, f32 compute (tight) ---
    B = 8
    state = jax.random.uniform(k_state, (B, STATE_DIM), jnp.float32, 0.5, 1.0)
    action = jax.random.uniform(k_action, (B, ACTION_DIM), jnp.float32, -0.78, 0.78)

    q = jax.block_until_ready(critic_forward(state, action, prep_f32))
    q_ref = critic_forward_ref(state, action, params)
    assert q.shape == (B, 1)
    assert jnp.allclose(q, q_ref, atol=1e-5, rtol=1e-5), "f32 mismatch vs JAX reference"

    # --- check 2: ragged batch, 2 grid steps + 2 inner chunks, bf16 MXU ---
    B2 = 300
    state2 = jax.random.uniform(k_state, (B2, STATE_DIM), jnp.float32, 0.5, 1.0)
    action2 = jax.random.uniform(k_action, (B2, ACTION_DIM), jnp.float32, -0.78, 0.78)

    q2 = jax.block_until_ready(
        critic_forward(state2, action2, prep_bf16, block_b=256))
    q2_ref = critic_forward_ref(state2, action2, params)
    assert q2.shape == (B2, 1)
    assert jnp.allclose(q2, q2_ref, atol=5e-2, rtol=5e-2), "bf16 mismatch vs JAX reference"

    # --- check 3: default production path (block_b=2048, 16 inner chunks,
    #     ragged last grid step), bf16 MXU ---
    B3 = 4100
    state3 = jax.random.uniform(k_state, (B3, STATE_DIM), jnp.float32, 0.5, 1.0)
    action3 = jax.random.uniform(k_action, (B3, ACTION_DIM), jnp.float32, -0.78, 0.78)

    q3 = jax.block_until_ready(critic_forward(state3, action3, prep_bf16))
    q3_ref = critic_forward_ref(state3, action3, params)
    assert q3.shape == (B3, 1)
    assert jnp.allclose(q3, q3_ref, atol=5e-2, rtol=5e-2), "bf16 mismatch vs JAX reference"

    print("KERNEL_OK")
</pallas_src>

<mosaic_0001>
module attributes {stable_mosaic.version = 11 : i64} {
  func.func @critic_kernel(%arg0: i32, %arg1: memref<8x6xf32, #tpu.memory_space<vmem>>, %arg2: memref<8x2xf32, #tpu.memory_space<vmem>>, %arg3: memref<32x6xf32, #tpu.memory_space<vmem>>, %arg4: memref<32x2xf32, #tpu.memory_space<vmem>>, %arg5: memref<32x1xf32, #tpu.memory_space<vmem>>, %arg6: memref<32x32xf32, #tpu.memory_space<vmem>>, %arg7: memref<32x1xf32, #tpu.memory_space<vmem>>, %arg8: memref<1x32xf32, #tpu.memory_space<vmem>>, %arg9: memref<1x1xf32, #tpu.memory_space<vmem>>, %arg10: memref<1x8xf32, #tpu.memory_space<vmem>>) attributes {dimension_semantics = [#tpu.dimension_semantics<parallel>], iteration_bounds = array<i64: 1>, scalar_prefetch = 0 : i64, scratch_operands = 0 : i64, tpu.core_type = #tpu.core_type<tc>, window_params = [{transform_indices = @transform_0, window_bounds = array<i64: 8, 6>}, {transform_indices = @transform_1, window_bounds = array<i64: 8, 2>}, {pipeline_mode = #tpu.pipeline_mode<synchronous>, transform_indices = @transform_2, window_bounds = array<i64: 32, 6>}, {pipeline_mode = #tpu.pipeline_mode<synchronous>, transform_indices = @transform_3, window_bounds = array<i64: 32, 2>}, {pipeline_mode = #tpu.pipeline_mode<synchronous>, transform_indices = @transform_4, window_bounds = array<i64: 32, 1>}, {pipeline_mode = #tpu.pipeline_mode<synchronous>, transform_indices = @transform_5, window_bounds = array<i64: 32, 32>}, {pipeline_mode = #tpu.pipeline_mode<synchronous>, transform_indices = @transform_6, window_bounds = array<i64: 32, 1>}, {pipeline_mode = #tpu.pipeline_mode<synchronous>, transform_indices = @transform_7, window_bounds = array<i64: 1, 32>}, {pipeline_mode = #tpu.pipeline_mode<synchronous>, transform_indices = @transform_8, window_bounds = array<i64: 1, 1>}, {transform_indices = @transform_9, window_bounds = array<i64: 1, 8>}]} {
    %c0 = arith.constant 0 : index
    %c0_0 = arith.constant 0 : index
    %0 = vector.load %arg3[%c0, %c0_0] : memref<32x6xf32, #tpu.memory_space<vmem>>, vector<32x6xf32>
    %c0_1 = arith.constant 0 : index
    %c0_2 = arith.constant 0 : index
    %1 = vector.load %arg4[%c0_1, %c0_2] : memref<32x2xf32, #tpu.memory_space<vmem>>, vector<32x2xf32>
    %c0_3 = arith.constant 0 : index
    %c0_4 = arith.constant 0 : index
    %2 = vector.load %arg5[%c0_3, %c0_4] : memref<32x1xf32, #tpu.memory_space<vmem>>, vector<32x1xf32>
    %c0_5 = arith.constant 0 : index
    %c0_6 = arith.constant 0 : index
    %3 = vector.load %arg6[%c0_5, %c0_6] : memref<32x32xf32, #tpu.memory_space<vmem>>, vector<32x32xf32>
    %c0_7 = arith.constant 0 : index
    %c0_8 = arith.constant 0 : index
    %4 = vector.load %arg7[%c0_7, %c0_8] : memref<32x1xf32, #tpu.memory_space<vmem>>, vector<32x1xf32>
    %c0_9 = arith.constant 0 : index
    %c0_10 = arith.constant 0 : index
    %5 = vector.load %arg8[%c0_9, %c0_10] : memref<1x32xf32, #tpu.memory_space<vmem>>, vector<1x32xf32>
    %c0_11 = arith.constant 0 : index
    %c0_12 = arith.constant 0 : index
    %6 = vector.load %arg9[%c0_11, %c0_12] : memref<1x1xf32, #tpu.memory_space<vmem>>, vector<1x1xf32>
    %c0_i32 = arith.constant 0 : i32
    %c8_i32 = arith.constant 8 : i32
    %7 = arith.muli %c0_i32, %c8_i32 : i32
    %8 = arith.index_cast %7 : i32 to index
    %c0_13 = arith.constant 0 : index
    %9 = vector.load %arg1[%8, %c0_13] : memref<8x6xf32, #tpu.memory_space<vmem>>, vector<8x6xf32>
    %10 = arith.index_cast %7 : i32 to index
    %c0_14 = arith.constant 0 : index
    %11 = vector.load %arg2[%10, %c0_14] : memref<8x2xf32, #tpu.memory_space<vmem>>, vector<8x2xf32>
    %cst = arith.constant dense<0.000000e+00> : vector<32x8xf32>
    %12 = tpu.matmul %0, %9, %cst {dimension_numbers = #tpu.dot_dimension_numbers<[1], [1], [0], [0], [0, 0, 1, 0], [], []>} : vector<32x6xf32>, vector<8x6xf32>, vector<32x8xf32> -> vector<32x8xf32>
    %cst_15 = arith.constant dense<0.000000e+00> : vector<32x8xf32>
    %13 = tpu.matmul %1, %11, %cst_15 {dimension_numbers = #tpu.dot_dimension_numbers<[1], [1], [0], [0], [0, 0, 1, 0], [], []>} : vector<32x2xf32>, vector<8x2xf32>, vector<32x8xf32> -> vector<32x8xf32>
    %14 = arith.addf %12, %13 : vector<32x8xf32>
    %15 = vector.broadcast %2 : vector<32x1xf32> to vector<32x8xf32>
    %16 = arith.addf %14, %15 : vector<32x8xf32>
    %cst_16 = arith.constant 0.000000e+00 : f32
    %17 = vector.broadcast %cst_16 : f32 to vector<32x8xf32>
    %18 = arith.maximumf %16, %17 : vector<32x8xf32>
    %cst_17 = arith.constant dense<0.000000e+00> : vector<32x8xf32>
    %19 = tpu.matmul %3, %18, %cst_17 {dimension_numbers = #tpu.dot_dimension_numbers<[1], [0], [0], [1], [0, 0, 1, 1], [], []>} : vector<32x32xf32>, vector<32x8xf32>, vector<32x8xf32> -> vector<32x8xf32>
    %20 = vector.broadcast %4 : vector<32x1xf32> to vector<32x8xf32>
    %21 = arith.addf %19, %20 : vector<32x8xf32>
    %cst_18 = arith.constant 0.000000e+00 : f32
    %22 = vector.broadcast %cst_18 : f32 to vector<32x8xf32>
    %23 = arith.maximumf %21, %22 : vector<32x8xf32>
    %cst_19 = arith.constant dense<0.000000e+00> : vector<1x8xf32>
    %24 = tpu.matmul %5, %23, %cst_19 {dimension_numbers = #tpu.dot_dimension_numbers<[1], [0], [0], [1], [0, 0, 1, 1], [], []>} : vector<1x32xf32>, vector<32x8xf32>, vector<1x8xf32> -> vector<1x8xf32>
    %25 = vector.broadcast %6 : vector<1x1xf32> to vector<1x8xf32>
    %26 = arith.addf %24, %25 : vector<1x8xf32>
    %c0_20 = arith.constant 0 : index
    %27 = arith.index_cast %7 : i32 to index
    %28 = vector.load %arg10[%c0_20, %27] : memref<1x8xf32, #tpu.memory_space<vmem>>, vector<1x8xf32>
    tpu.vector_store %arg10[%c0_20, %27], %26 {strides = array<i32>} : memref<1x8xf32, #tpu.memory_space<vmem>>, vector<1x8xf32>,
    %c1_i32 = arith.constant 1 : i32
    return
  }
  func.func @transform_0(%arg0: i32) -> (i32, i32) {
    %c0_i32 = arith.constant 0 : i32
    %c0_i32_0 = arith.constant 0 : i32
    return %arg0, %c0_i32 : i32, i32
  }
  func.func @transform_1(%arg0: i32) -> (i32, i32) {
    %c0_i32 = arith.constant 0 : i32
    %c0_i32_0 = arith.constant 0 : i32
    return %arg0, %c0_i32 : i32, i32
  }
  func.func @transform_2(%arg0: i32) -> (i32, i32) {
    %c0_i32 = arith.constant 0 : i32
    %c0_i32_0 = arith.constant 0 : i32
    %c0_i32_1 = arith.constant 0 : i32
    return %c0_i32, %c0_i32_0 : i32, i32
  }
  func.func @transform_3(%arg0: i32) -> (i32, i32) {
    %c0_i32 = arith.constant 0 : i32
    %c0_i32_0 = arith.constant 0 : i32
    %c0_i32_1 = arith.constant 0 : i32
    return %c0_i32, %c0_i32_0 : i32, i32
  }
  func.func @transform_4(%arg0: i32) -> (i32, i32) {
    %c0_i32 = arith.constant 0 : i32
    %c0_i32_0 = arith.constant 0 : i32
    %c0_i32_1 = arith.constant 0 : i32
    return %c0_i32, %c0_i32_0 : i32, i32
  }
  func.func @transform_5(%arg0: i32) -> (i32, i32) {
    %c0_i32 = arith.constant 0 : i32
    %c0_i32_0 = arith.constant 0 : i32
    %c0_i32_1 = arith.constant 0 : i32
    return %c0_i32, %c0_i32_0 : i32, i32
  }
  func.func @transform_6(%arg0: i32) -> (i32, i32) {
    %c0_i32 = arith.constant 0 : i32
    %c0_i32_0 = arith.constant 0 : i32
    %c0_i32_1 = arith.constant 0 : i32
    return %c0_i32, %c0_i32_0 : i32, i32
  }
  func.func @transform_7(%arg0: i32) -> (i32, i32) {
    %c0_i32 = arith.constant 0 : i32
    %c0_i32_0 = arith.constant 0 : i32
    %c0_i32_1 = arith.constant 0 : i32
    return %c0_i32, %c0_i32_0 : i32, i32
  }
  func.func @transform_8(%arg0: i32) -> (i32, i32) {
    %c0_i32 = arith.constant 0 : i32
    %c0_i32_0 = arith.constant 0 : i32
    %c0_i32_1 = arith.constant 0 : i32
    return %c0_i32, %c0_i32_0 : i32, i32
  }
  func.func @transform_9(%arg0: i32) -> (i32, i32) {
    %c0_i32 = arith.constant 0 : i32
    %c0_i32_0 = arith.constant 0 : i32
    return %c0_i32, %arg0 : i32, i32
  }
}

</mosaic_0001>

<llo_original>
// kernel: tpu_custom_call.1
$region0: #{tpu_custom_call.1}
  #allocation0 [shape = 'u32[]', space=smem, size = 0x4, offset = 0x4, fixed_abs, tag = 'smem constant byte address 0x4 - core index']
  #allocation1 [shape = 'u32[144,128]{1,0:T(1,128)}', space=vmem, size = 0x12000, scoped, tag = 'internal scratch']
  #allocation2 [shape = 'f32[1,1]{1,0:T(1,128)S(1)}', space=vmem, size = 0x200, scoped, tag = 'scoped memory for tpu_custom_call.1']
  %s0 = inlined_call_operand.vmem [shape: f32[8,6], index: 0, kind: input, shape index: {}]
  %s1 = inlined_call_operand.vmem [shape: f32[8,2], index: 1, kind: input, shape index: {}]
  %s2 = inlined_call_operand.vmem [shape: f32[32,6], index: 2, kind: input, shape index: {}]
  %s3 = inlined_call_operand.vmem [shape: f32[32,2], index: 3, kind: input, shape index: {}]
  %s4 = inlined_call_operand.vmem [shape: f32[32,1], index: 4, kind: input, shape index: {}]
  %s5 = inlined_call_operand.vmem [shape: f32[32,32], index: 5, kind: input, shape index: {}]
  %s6 = inlined_call_operand.vmem [shape: f32[32,1], index: 6, kind: input, shape index: {}]
  %s7 = inlined_call_operand.vmem [shape: f32[1,32], index: 7, kind: input, shape index: {}]
  %s8 = inlined_call_operand.<no memory space> [shape: f32[1,1], index: 8, kind: input, shape index: {}]
  %s9 = inlined_call_operand.hbm [shape: f32[1,8], index: 9, kind: output, shape index: {}]
  %s10 = sld [smem:[#allocation0]]
  $region46: #{tpu_custom_call.1} parent=0
    _
  %s12 = ssub.s32 1, %s10
  %s13 = scalar_select 0, %s12, %s10
  %v14 = vstv %s8
  %15 = vst [vmem:[#allocation2] sm:$0x1] %v14
  $region1: #{tpu_custom_call.1} parent=0
    #allocation3 [shape = 'u8[512]{0}', space=vmem, size = 0x400, scoped, tag = 'output window, operand 0, single buffered']
    #allocation4 [shape = 's32[1]{0}', space=sflag, size = 0x4, scoped, tag = 'scoped memory for tpu_custom_call.1']
    %16 = vsyncpa [#allocation4], 0
    // Predicated region
    $region2: #{tpu_custom_call.1} parent=1 // pred_check
      _
    $region3: #{tpu_custom_call.1} parent=1 // pred_check_branch
      %18 = sbr.rel (0) target = $region5
    $region4: #{tpu_custom_call.1} parent=1 // pred_region
      _
    $region5: #{tpu_custom_call.1} parent=1 // pred_fallthru
      _
    // Predicated region
    $region6: #{tpu_custom_call.1} parent=1 // pred_check
      _
    $region7: #{tpu_custom_call.1} parent=1 // pred_check_branch
      %20 = sbr.rel (0) target = $region9
    $region8: #{tpu_custom_call.1} parent=1 // pred_region
      _
    $region9: #{tpu_custom_call.1} parent=1 // pred_fallthru
      _
    // Predicated region
    $region10: #{tpu_custom_call.1} parent=1 // pred_check
      _
    $region11: #{tpu_custom_call.1} parent=1 // pred_check_branch
      %22 = sbr.rel (0) target = $region13
    $region12: #{tpu_custom_call.1} parent=1 // pred_region
      _
    $region13: #{tpu_custom_call.1} parent=1 // pred_fallthru
      _
    // Predicated region
    $region14: #{tpu_custom_call.1} parent=1 // pred_check
      _
    $region15: #{tpu_custom_call.1} parent=1 // pred_check_branch
      %24 = sbr.rel (0) target = $region17
    $region16: #{tpu_custom_call.1} parent=1 // pred_region
      _
    $region17: #{tpu_custom_call.1} parent=1 // pred_fallthru
      _
    // Predicated region
    $region18: #{tpu_custom_call.1} parent=1 // pred_check
      _
    $region19: #{tpu_custom_call.1} parent=1 // pred_check_branch
      %26 = sbr.rel (0) target = $region21
    $region20: #{tpu_custom_call.1} parent=1 // pred_region
      _
    $region21: #{tpu_custom_call.1} parent=1 // pred_fallthru
      _
    // Predicated region
    $region22: #{tpu_custom_call.1} parent=1 // pred_check
      _
    $region23: #{tpu_custom_call.1} parent=1 // pred_check_branch
      %28 = sbr.rel (0) target = $region25
    $region24: #{tpu_custom_call.1} parent=1 // pred_region
      _
    $region25: #{tpu_custom_call.1} parent=1 // pred_fallthru
      _
    // Predicated region
    $region26: #{tpu_custom_call.1} parent=1 // pred_check
      _
    $region27: #{tpu_custom_call.1} parent=1 // pred_check_branch
      %30 = sbr.rel (0) target = $region29
    $region28: #{tpu_custom_call.1} parent=1 // pred_region
      _
    $region29: #{tpu_custom_call.1} parent=1 // pred_fallthru
      _
    // Predicated region
    $region30: #{tpu_custom_call.1} parent=1 // pred_check
      _
    $region31: #{tpu_custom_call.1} parent=1 // pred_check_branch
      %32 = sbr.rel (0) target = $region33
    $region32: #{tpu_custom_call.1} parent=1 // pred_region
      _
    $region33: #{tpu_custom_call.1} parent=1 // pred_fallthru
      _
    // Predicated region
    $region34: #{tpu_custom_call.1} parent=1 // pred_check
      _
    $region35: #{tpu_custom_call.1} parent=1 // pred_check_branch
      %34 = sbr.rel (0) target = $region37
    $region36: #{tpu_custom_call.1} parent=1 // pred_region
      _
    $region37: #{tpu_custom_call.1} parent=1 // pred_fallthru
      _
    %v35 = vld [vmem:[%s2] sm:$0xff]
    %v36 = vld [vmem:[%s2 + $0x8] sm:$0xff]
    %v37 = vld [vmem:[%s2 + $0x10] sm:$0xff]
    %v38 = vld [vmem:[%s2 + $0x18] sm:$0xff]
    %v39 = vld [vmem:[%s3] sm:$0xff]
    %v40 = vld [vmem:[%s3 + $0x8] sm:$0xff]
    %v41 = vld [vmem:[%s3 + $0x10] sm:$0xff]
    %v42 = vld [vmem:[%s3 + $0x18] sm:$0xff]
    %v43 = vld [vmem:[%s4] sm:$0xff]
    %v44 = vld [vmem:[%s4 + $0x8] sm:$0xff]
    %v45 = vld [vmem:[%s4 + $0x10] sm:$0xff]
    %v46 = vld [vmem:[%s4 + $0x18] sm:$0xff]
    %v47 = vld [vmem:[%s5] sm:$0xff]
    %v48 = vld [vmem:[%s5 + $0x8] sm:$0xff]
    %v49 = vld [vmem:[%s5 + $0x10] sm:$0xff]
    %v50 = vld [vmem:[%s5 + $0x18] sm:$0xff]
    %v51 = vld [vmem:[%s6] sm:$0xff]
    %v52 = vld [vmem:[%s6 + $0x8] sm:$0xff]
    %v53 = vld [vmem:[%s6 + $0x10] sm:$0xff]
    %v54 = vld [vmem:[%s6 + $0x18] sm:$0xff]
    %v55 = vld [vmem:[%s7] sm:$0x1]
    %v56 = vld [vmem:[#allocation2] sm:$0x1]
    %v57 = vld [vmem:[%s0] sm:$0xff]
    %v58 = vld [vmem:[%s1] sm:$0xff]
    %vm59 = vcmask 15360
    %v61 = vsel %vm59, %v39, 0
    %v64 = vsel %vm59, %v40, 0
    %v67 = vsel %vm59, %v41, 0
    %v70 = vsel %vm59, %v42, 0
    %v73 = vsel %vm59, %v58, 0
    %75 = vmatprep.subr.mxu0 0.0
    %76 = vmatpush1.xpose.msra.mxu0 0.0
    %77 = vmatprep.subr.mxu0 0.0
    %78 = vmatpush1.xpose.msra.mxu0 0.0
    %79 = vmatprep.subr.mxu0 0.0
    %80 = vmatpush1.xpose.msra.mxu0 0.0
    %81 = vmatprep.subr.mxu0 0.0
    %82 = vmatpush1.xpose.msra.mxu0 0.0
    %83 = vmatprep.subr.mxu0 0.0
    %84 = vmatpush1.xpose.msra.mxu0 0.0
    %85 = vmatprep.subr.mxu0 0.0
    %86 = vmatpush1.xpose.msra.mxu0 0.0
    %87 = vmatprep.subr.mxu0 0.0
    %88 = vmatpush1.xpose.msra.mxu0 0.0
    %89 = vmatprep.subr.mxu0 0.0
    %90 = vmatpush1.xpose.msra.mxu0 0.0
    %91 = vmatprep.subr.mxu0 0.0
    %92 = vmatpush1.xpose.msra.mxu0 0.0
    %93 = vmatprep.subr.mxu0 0.0
    %94 = vmatpush1.xpose.msra.mxu0 0.0
    %95 = vmatprep.subr.mxu0 0.0
    %96 = vmatpush1.xpose.msra.mxu0 0.0
    %97 = vmatprep.subr.mxu0 0.0
    %98 = vmatpush1.xpose.msra.mxu0 0.0
    %99 = vmatprep.subr.mxu0 0.0
    %100 = vmatpush1.xpose.msra.mxu0 0.0
    %101 = vmatprep.subr.mxu0 0.0
    %102 = vmatpush1.xpose.msra.mxu0 0.0
    %103 = vmatprep.subr.mxu0 0.0
    %104 = vmatpush1.xpose.msra.mxu0 0.0
    %105 = vmatprep.subr.mxu0 0.0
    %106 = vmatpush1.xpose.msra.mxu0 %v73
    %107 = vmatprep.subr.mxu0 0.0
    %108 = vmatpush2.xpose.msra.mxu0 0.0
    %109 = vmatprep.subr.mxu0 0.0
    %110 = vmatpush2.xpose.msra.mxu0 0.0
    %111 = vmatprep.subr.mxu0 0.0
    %112 = vmatpush2.xpose.msra.mxu0 0.0
    %113 = vmatprep.subr.mxu0 0.0
    %114 = vmatpush2.xpose.msra.mxu0 0.0
    %115 = vmatprep.subr.mxu0 0.0
    %116 = vmatpush2.xpose.msra.mxu0 0.0
    %117 = vmatprep.subr.mxu0 0.0
    %118 = vmatpush2.xpose.msra.mxu0 0.0
    %119 = vmatprep.subr.mxu0 0.0
    %120 = vmatpush2.xpose.msra.mxu0 0.0
    %121 = vmatprep.subr.mxu0 0.0
    %122 = vmatpush2.xpose.msra.mxu0 0.0
    %123 = vmatprep.subr.mxu0 0.0
    %124 = vmatpush2.xpose.msra.mxu0 0.0
    %125 = vmatprep.subr.mxu0 0.0
    %126 = vmatpush2.xpose.msra.mxu0 0.0
    %127 = vmatprep.subr.mxu0 0.0
    %128 = vmatpush2.xpose.msra.mxu0 0.0
    %129 = vmatprep.subr.mxu0 0.0
    %130 = vmatpush2.xpose.msra.mxu0 0.0
    %131 = vmatprep.subr.mxu0 0.0
    %132 = vmatpush2.xpose.msra.mxu0 0.0
    %133 = vmatprep.subr.mxu0 0.0
    %134 = vmatpush2.xpose.msra.mxu0 0.0
    %135 = vmatprep.subr.mxu0 0.0
    %136 = vmatpush2.xpose.msra.mxu0 0.0
    %137 = vmatprep.subr.mxu0 0.0
    %138 = vmatpush2.xpose.msra.mxu0 0.0
    %139 = vmatprep.mubr.f32.mxu0 0.0
    %140 = vmatmul.mubr.f32.gmra.mxu0 %v61
    %v141 = vpop.f32.mrf.mxu0
    %v142 = vadd.f32 0.0, %v141
    %v143 = vpop.f32.mrf.mxu0
    %144 = vmatprep.mubr.f32.mxu0 0.0
    %145 = vmatmul.mubr.f32.gmra.mxu0 %v64
    %v146 = vpop.f32.mrf.mxu0
    %v147 = vadd.f32 0.0, %v146
    %v148 = vpop.f32.mrf.mxu0
    %149 = vmatprep.mubr.f32.mxu0 0.0
    %150 = vmatmul.mubr.f32.gmra.mxu0 %v67
    %v151 = vpop.f32.mrf.mxu0
    %v152 = vadd.f32 0.0, %v151
    %v153 = vpop.f32.mrf.mxu0
    %154 = vmatprep.mubr.f32.mxu0 0.0
    %155 = vmatmul.mubr.f32.gmra.mxu0 %v70
    %v156 = vpop.f32.mrf.mxu0
    %v157 = vadd.f32 0.0, %v156
    %v158 = vpop.f32.mrf.mxu0
    %159 = vdwg.mxu0
    %vm160 = vcmask 48128
    %v162 = vsel %vm160, %v35, 0
    %v165 = vsel %vm160, %v36, 0
    %v168 = vsel %vm160, %v37, 0
    %v171 = vsel %vm160, %v38, 0
    %v174 = vsel %vm160, %v57, 0
    %176 = vmatprep.subr.mxu0 0.0
    %177 = vmatpush1.xpose.msra.mxu0 0.0
    %178 = vmatprep.subr.mxu0 0.0
    %179 = vmatpush1.xpose.msra.mxu0 0.0
    %180 = vmatprep.subr.mxu0 0.0
    %181 = vmatpush1.xpose.msra.mxu0 0.0
    %182 = vmatprep.subr.mxu0 0.0
    %183 = vmatpush1.xpose.msra.mxu0 0.0
    %184 = vmatprep.subr.mxu0 0.0
    %185 = vmatpush1.xpose.msra.mxu0 0.0
    %186 = vmatprep.subr.mxu0 0.0
    %187 = vmatpush1.xpose.msra.mxu0 0.0
    %188 = vmatprep.subr.mxu0 0.0
    %189 = vmatpush1.xpose.msra.mxu0 0.0
    %190 = vmatprep.subr.mxu0 0.0
    %191 = vmatpush1.xpose.msra.mxu0 0.0
    %192 = vmatprep.subr.mxu0 0.0
    %193 = vmatpush1.xpose.msra.mxu0 0.0
    %194 = vmatprep.subr.mxu0 0.0
    %195 = vmatpush1.xpose.msra.mxu0 0.0
    %196 = vmatprep.subr.mxu0 0.0
    %197 = vmatpush1.xpose.msra.mxu0 0.0
    %198 = vmatprep.subr.mxu0 0.0
    %199 = vmatpush1.xpose.msra.mxu0 0.0
    %200 = vmatprep.subr.mxu0 0.0
    %201 = vmatpush1.xpose.msra.mxu0 0.0
    %202 = vmatprep.subr.mxu0 0.0
    %203 = vmatpush1.xpose.msra.mxu0 0.0
    %204 = vmatprep.subr.mxu0 0.0
    %205 = vmatpush1.xpose.msra.mxu0 0.0
    %206 = vmatprep.subr.mxu0 0.0
    %207 = vmatpush1.xpose.msra.mxu0 %v174
    %208 = vmatprep.subr.mxu0 0.0
    %209 = vmatpush2.xpose.msra.mxu0 0.0
    %210 = vmatprep.subr.mxu0 0.0
    %211 = vmatpush2.xpose.msra.mxu0 0.0
    %212 = vmatprep.subr.mxu0 0.0
    %213 = vmatpush2.xpose.msra.mxu0 0.0
    %214 = vmatprep.subr.mxu0 0.0
    %215 = vmatpush2.xpose.msra.mxu0 0.0
    %216 = vmatprep.subr.mxu0 0.0
    %217 = vmatpush2.xpose.msra.mxu0 0.0
    %218 = vmatprep.subr.mxu0 0.0
    %219 = vmatpush2.xpose.msra.mxu0 0.0
    %220 = vmatprep.subr.mxu0 0.0
    %221 = vmatpush2.xpose.msra.mxu0 0.0
    %222 = vmatprep.subr.mxu0 0.0
    %223 = vmatpush2.xpose.msra.mxu0 0.0
    %224 = vmatprep.subr.mxu0 0.0
    %225 = vmatpush2.xpose.msra.mxu0 0.0
    %226 = vmatprep.subr.mxu0 0.0
    %227 = vmatpush2.xpose.msra.mxu0 0.0
    %228 = vmatprep.subr.mxu0 0.0
    %229 = vmatpush2.xpose.msra.mxu0 0.0
    %230 = vmatprep.subr.mxu0 0.0
    %231 = vmatpush2.xpose.msra.mxu0 0.0
    %232 = vmatprep.subr.mxu0 0.0
    %233 = vmatpush2.xpose.msra.mxu0 0.0
    %234 = vmatprep.subr.mxu0 0.0
    %235 = vmatpush2.xpose.msra.mxu0 0.0
    %236 = vmatprep.subr.mxu0 0.0
    %237 = vmatpush2.xpose.msra.mxu0 0.0
    %238 = vmatprep.subr.mxu0 0.0
    %239 = vmatpush2.xpose.msra.mxu0 0.0
    %240 = vmatprep.mubr.f32.mxu0 0.0
    %241 = vmatmul.mubr.f32.gmra.mxu0 %v162
    %v242 = vpop.f32.mrf.mxu0
    %v243 = vadd.f32 %v142, %v242
    %v244 = vpop.f32.mrf.mxu0
    %245 = vmatprep.mubr.f32.mxu0 0.0
    %246 = vmatmul.mubr.f32.gmra.mxu0 %v165
    %v247 = vpop.f32.mrf.mxu0
    %v248 = vadd.f32 %v147, %v247
    %v249 = vpop.f32.mrf.mxu0
    %250 = vmatprep.mubr.f32.mxu0 0.0
    %251 = vmatmul.mubr.f32.gmra.mxu0 %v168
    %v252 = vpop.f32.mrf.mxu0
    %v253 = vadd.f32 %v152, %v252
    %v254 = vpop.f32.mrf.mxu0
    %255 = vmatprep.mubr.f32.mxu0 0.0
    %256 = vmatmul.mubr.f32.gmra.mxu0 %v171
    %v257 = vpop.f32.mrf.mxu0
    %v258 = vadd.f32 %v157, %v257
    %v259 = vpop.f32.mrf.mxu0
    %260 = vdwg.mxu0
    %262 = vset.pattern.permute.xlu0 0
    %263 = vperm.xlu0 %262, %v43
    %v264 = vpop.permute.xlu0 %263
    %267 = vset.pattern.permute.xlu0 0
    %268 = vperm.xlu0 %267, %v44
    %v269 = vpop.permute.xlu0 %268
    %272 = vset.pattern.permute.xlu0 0
    %273 = vperm.xlu0 %272, %v45
    %v274 = vpop.permute.xlu0 %273
    %277 = vset.pattern.permute.xlu0 0
    %278 = vperm.xlu0 %277, %v46
    %v279 = vpop.permute.xlu0 %278
    %v281 = vadd.f32 %v243, %v264
    %v282 = vadd.f32 %v248, %v269
    %v283 = vadd.f32 %v253, %v274
    %v284 = vadd.f32 %v258, %v279
    %v285 = vmax.f32 %v281, 0.0
    %v286 = vmax.f32 %v282, 0.0
    %v287 = vmax.f32 %v283, 0.0
    %v288 = vmax.f32 %v284, 0.0
    %290 = vset.pattern.permute.xlu0 0
    %291 = vperm.xlu0 %290, %v51
    %v292 = vpop.permute.xlu0 %291
    %295 = vset.pattern.permute.xlu0 0
    %296 = vperm.xlu0 %295, %v52
    %v297 = vpop.permute.xlu0 %296
    %300 = vset.pattern.permute.xlu0 0
    %301 = vperm.xlu0 %300, %v53
    %v302 = vpop.permute.xlu0 %301
    %305 = vset.pattern.permute.xlu0 0
    %306 = vperm.xlu0 %305, %v54
    %v307 = vpop.permute.xlu0 %306
    %vm309 = vcmask 261120
    %v311 = vsel %vm309, %v47, 0
    %v314 = vsel %vm309, %v48, 0
    %v317 = vsel %vm309, %v49, 0
    %v320 = vsel %vm309, %v50, 0
    %322 = vmatprep.subr.mxu0 0.0
    %323 = vmatpush1.msra.mxu0 0.0
    %324 = vmatprep.subr.mxu0 0.0
    %325 = vmatpush1.msra.mxu0 0.0
    %326 = vmatprep.subr.mxu0 0.0
    %327 = vmatpush1.msra.mxu0 0.0
    %328 = vmatprep.subr.mxu0 0.0
    %329 = vmatpush1.msra.mxu0 0.0
    %330 = vmatprep.subr.mxu0 0.0
    %331 = vmatpush1.msra.mxu0 0.0
    %332 = vmatprep.subr.mxu0 0.0
    %333 = vmatpush1.msra.mxu0 0.0
    %334 = vmatprep.subr.mxu0 0.0
    %335 = vmatpush1.msra.mxu0 0.0
    %336 = vmatprep.subr.mxu0 0.0
    %337 = vmatpush1.msra.mxu0 0.0
    %338 = vmatprep.subr.mxu0 0.0
    %339 = vmatpush1.msra.mxu0 0.0
    %340 = vmatprep.subr.mxu0 0.0
    %341 = vmatpush1.msra.mxu0 0.0
    %342 = vmatprep.subr.mxu0 0.0
    %343 = vmatpush1.msra.mxu0 0.0
    %344 = vmatprep.subr.mxu0 0.0
    %345 = vmatpush1.msra.mxu0 0.0
    %346 = vmatprep.subr.mxu0 0.0
    %347 = vmatpush1.msra.mxu0 %v288
    %348 = vmatprep.subr.mxu0 0.0
    %349 = vmatpush1.msra.mxu0 %v287
    %350 = vmatprep.subr.mxu0 0.0
    %351 = vmatpush1.msra.mxu0 %v286
    %352 = vmatprep.subr.mxu0 0.0
    %353 = vmatpush1.msra.mxu0 %v285
    %354 = vmatprep.subr.mxu0 0.0
    %355 = vmatpush2.msra.mxu0 0.0
    %356 = vmatprep.subr.mxu0 0.0
    %357 = vmatpush2.msra.mxu0 0.0
    %358 = vmatprep.subr.mxu0 0.0
    %359 = vmatpush2.msra.mxu0 0.0
    %360 = vmatprep.subr.mxu0 0.0
    %361 = vmatpush2.msra.mxu0 0.0
    %362 = vmatprep.subr.mxu0 0.0
    %363 = vmatpush2.msra.mxu0 0.0
    %364 = vmatprep.subr.mxu0 0.0
    %365 = vmatpush2.msra.mxu0 0.0
    %366 = vmatprep.subr.mxu0 0.0
    %367 = vmatpush2.msra.mxu0 0.0
    %368 = vmatprep.subr.mxu0 0.0
    %369 = vmatpush2.msra.mxu0 0.0
    %370 = vmatprep.subr.mxu0 0.0
    %371 = vmatpush2.msra.mxu0 0.0
    %372 = vmatprep.subr.mxu0 0.0
    %373 = vmatpush2.msra.mxu0 0.0
    %374 = vmatprep.subr.mxu0 0.0
    %375 = vmatpush2.msra.mxu0 0.0
    %376 = vmatprep.subr.mxu0 0.0
    %377 = vmatpush2.msra.mxu0 0.0
    %378 = vmatprep.subr.mxu0 0.0
    %379 = vmatpush2.msra.mxu0 0.0
    %380 = vmatprep.subr.mxu0 0.0
    %381 = vmatpush2.msra.mxu0 0.0
    %382 = vmatprep.subr.mxu0 0.0
    %383 = vmatpush2.msra.mxu0 0.0
    %384 = vmatprep.subr.mxu0 0.0
    %385 = vmatpush2.msra.mxu0 0.0
    %386 = vmatprep.mubr.f32.mxu0 0.0
    %387 = vmatmul.mubr.f32.gmra.mxu0 %v311
    %v388 = vpop.f32.mrf.mxu0
    %v389 = vadd.f32 %v292, %v388
    %v390 = vpop.f32.mrf.mxu0
    %391 = vmatprep.mubr.f32.mxu0 0.0
    %392 = vmatmul.mubr.f32.gmra.mxu0 %v314
    %v393 = vpop.f32.mrf.mxu0
    %v394 = vadd.f32 %v297, %v393
    %v395 = vpop.f32.mrf.mxu0
    %396 = vmatprep.mubr.f32.mxu0 0.0
    %397 = vmatmul.mubr.f32.gmra.mxu0 %v317
    %v398 = vpop.f32.mrf.mxu0
    %v399 = vadd.f32 %v302, %v398
    %v400 = vpop.f32.mrf.mxu0
    %401 = vmatprep.mubr.f32.mxu0 0.0
    %402 = vmatmul.mubr.f32.gmra.mxu0 %v320
    %v403 = vpop.f32.mrf.mxu0
    %v404 = vadd.f32 %v307, %v403
    %v405 = vpop.f32.mrf.mxu0
    %406 = vdwg.mxu0
    %v407 = vmax.f32 %v389, 0.0
    %v408 = vmax.f32 %v394, 0.0
    %v409 = vmax.f32 %v399, 0.0
    %v410 = vmax.f32 %v404, 0.0
    %412 = vset.pattern.permute.xlu0 0
    %413 = vperm.xlu0 %412, %v56
    %v414 = vpop.permute.xlu0 %413
    %v416 = vlaneseq
    %v417 = vshrl.u32 %v416, 7
    %v418 = vsub.s32 0, %v417
    %v419 = vrot.slane %v414, %v418
    %v421 = vsel %vm309, %v55, 0
    %423 = vmatprep.subr.mxu0 0.0
    %424 = vmatpush1.msra.mxu0 0.0
    %425 = vmatprep.subr.mxu0 0.0
    %426 = vmatpush1.msra.mxu0 0.0
    %427 = vmatprep.subr.mxu0 0.0
    %428 = vmatpush1.msra.mxu0 0.0
    %429 = vmatprep.subr.mxu0 0.0
    %430 = vmatpush1.msra.mxu0 0.0
    %431 = vmatprep.subr.mxu0 0.0
    %432 = vmatpush1.msra.mxu0 0.0
    %433 = vmatprep.subr.mxu0 0.0
    %434 = vmatpush1.msra.mxu0 0.0
    %435 = vmatprep.subr.mxu0 0.0
    %436 = vmatpush1.msra.mxu0 0.0
    %437 = vmatprep.subr.mxu0 0.0
    %438 = vmatpush1.msra.mxu0 0.0
    %439 = vmatprep.subr.mxu0 0.0
    %440 = vmatpush1.msra.mxu0 0.0
    %441 = vmatprep.subr.mxu0 0.0
    %442 = vmatpush1.msra.mxu0 0.0
    %443 = vmatprep.subr.mxu0 0.0
    %444 = vmatpush1.msra.mxu0 0.0
    %445 = vmatprep.subr.mxu0 0.0
    %446 = vmatpush1.msra.mxu0 0.0
    %447 = vmatprep.subr.mxu0 0.0
    %448 = vmatpush1.msra.mxu0 %v410
    %449 = vmatprep.subr.mxu0 0.0
    %450 = vmatpush1.msra.mxu0 %v409
    %451 = vmatprep.subr.mxu0 0.0
    %452 = vmatpush1.msra.mxu0 %v408
    %453 = vmatprep.subr.mxu0 0.0
    %454 = vmatpush1.msra.mxu0 %v407
    %455 = vmatprep.subr.mxu0 0.0
    %456 = vmatpush2.msra.mxu0 0.0
    %457 = vmatprep.subr.mxu0 0.0
    %458 = vmatpush2.msra.mxu0 0.0
    %459 = vmatprep.subr.mxu0 0.0
    %460 = vmatpush2.msra.mxu0 0.0
    %461 = vmatprep.subr.mxu0 0.0
    %462 = vmatpush2.msra.mxu0 0.0
    %463 = vmatprep.subr.mxu0 0.0
    %464 = vmatpush2.msra.mxu0 0.0
    %465 = vmatprep.subr.mxu0 0.0
    %466 = vmatpush2.msra.mxu0 0.0
    %467 = vmatprep.subr.mxu0 0.0
    %468 = vmatpush2.msra.mxu0 0.0
    %469 = vmatprep.subr.mxu0 0.0
    %470 = vmatpush2.msra.mxu0 0.0
    %471 = vmatprep.subr.mxu0 0.0
    %472 = vmatpush2.msra.mxu0 0.0
    %473 = vmatprep.subr.mxu0 0.0
    %474 = vmatpush2.msra.mxu0 0.0
    %475 = vmatprep.subr.mxu0 0.0
    %476 = vmatpush2.msra.mxu0 0.0
    %477 = vmatprep.subr.mxu0 0.0
    %478 = vmatpush2.msra.mxu0 0.0
    %479 = vmatprep.subr.mxu0 0.0
    %480 = vmatpush2.msra.mxu0 0.0
    %481 = vmatprep.subr.mxu0 0.0
    %482 = vmatpush2.msra.mxu0 0.0
    %483 = vmatprep.subr.mxu0 0.0
    %484 = vmatpush2.msra.mxu0 0.0
    %485 = vmatprep.subr.mxu0 0.0
    %486 = vmatpush2.msra.mxu0 0.0
    %487 = vmatprep.mubr.f32.mxu0 0.0
    %488 = vmatmul.mubr.f32.gmra.mxu0 %v421
    %v489 = vpop.f32.mrf.mxu0
    %v490 = vadd.f32 %v419, %v489
    %v491 = vpop.f32.mrf.mxu0
    %492 = vdwg.mxu0
    %vm493 = vcmask 57344
    %494 = vst.msk [vmem:[#allocation3] sm:$0x1] %vm493, %v490
    // Predicated region
    $region38: #{tpu_custom_call.1} parent=1 // pred_check
      _
    $region39: #{tpu_custom_call.1} parent=1 // pred_check_branch
      %496 = sbr.rel (0) target = $region41
    $region40: #{tpu_custom_call.1} parent=1 // pred_region
      %s498 = ssub.s32 16, 16
      %499 = vsyncadd [#allocation4], %s498
      %s501 = sshll.u32 [#allocation3], 4
      %s502 = int_to_ptr.vmem [resolvable:$true] %s501
      %504 = dma.vmem_to_hbm [thread:$0]  %s502, 16, %s9, [#allocation4]
    $region41: #{tpu_custom_call.1} parent=1 // pred_fallthru
      _
    // Predicated region
    $region42: #{tpu_custom_call.1} parent=1 // pred_check
      _
    $region43: #{tpu_custom_call.1} parent=1 // pred_check_branch
      %506 = sbr.rel (0) target = $region45
    $region44: #{tpu_custom_call.1} parent=1 // pred_region
      %507 = dma.done [#allocation4], 16
    $region45: #{tpu_custom_call.1} parent=1 // pred_fallthru
      _
    %508 = vsyncpa [#allocation4], 1

</llo_original>
